<compile_context>
chip_gen: v5e
topology: v5e:2x2
jax: 0.10.0
libtpu: 0.0.40
codegen_flags: <defaults>
</compile_context>

<pallas_src>
import functools

import jax
import jax.numpy as jnp
from jax.experimental import pallas as pl
from jax.experimental.pallas import tpu as pltpu

LANE = 128
SUBLANE = 8


def _round_up(x, m):
    return (x + m - 1) // m * m


# ----------------------------- Pallas kernel --------------------------------
def _mlp_kernel(x_ref, w_ref, b_ref, o_ref, xpad_ref):
    """Fused (Linear -> ReLU -> Dropout[eval])*N -> Linear for one batch tile.

    x_ref    : (TILE_B, d_in)  f32   -- pipelined per grid step (raw input)
    w_ref    : (L, DP, DP)     bf16  -- zero-padded weights, VMEM-resident
    b_ref    : (L, 1,  DP)     f32   -- zero-padded biases,  VMEM-resident
    o_ref    : (OUT_P, TILE_B) f32   -- transposed, lane-dense output tile
    xpad_ref : (TILE_B, DP)    bf16  -- scratch: cast + zero-padded activation
    """
    d_in = x_ref.shape[1]
    n_layers = w_ref.shape[0]
    out_rows = o_ref.shape[0]

    # Cast + zero-pad the input tile inside the kernel.  The padding columns
    # only need zeroing once: every step writes nothing beyond column d_in.
    @pl.when(pl.program_id(0) == 0)
    def _():
        xpad_ref[...] = jnp.zeros_like(xpad_ref)

    xpad_ref[:, :d_in] = x_ref[...].astype(jnp.bfloat16)

    # Layer 0: Linear (bf16 MXU, f32 accumulation) + bias (f32 VPU).
    h = jnp.dot(xpad_ref[...], w_ref[0],
                preferred_element_type=jnp.float32) + b_ref[0]

    # Hidden layers: ReLU -> (Dropout = identity in eval mode) -> Linear.
    # TODO(synk): training-mode Dropout(0.2) (pltpu.prng_seed +
    #             pltpu.prng_random_bits Bernoulli mask with 1/(1-p) scaling)
    #             intentionally omitted; this kernel is inference-only.
    for l in range(1, n_layers):
        h = jnp.maximum(h, 0.0)                       # ReLU in f32 (v5e-safe)
        h = jnp.dot(h.astype(jnp.bfloat16), w_ref[l],
                    preferred_element_type=jnp.float32) + b_ref[l]

    # Transposed writeback: only the first OUT_P sublanes of h^T are real, so
    # the HBM output slab is (OUT_P, Bp) f32 instead of (Bp, 128) f32.
    o_ref[...] = jnp.transpose(h)[:out_rows, :].astype(o_ref.dtype)


# ------------------------------ host wrapper ---------------------------------
def pack_params(params):
    """Zero-pad every layer to a common lane-aligned width and stack.

    Weights are stored (in, out) (transposed vs. torch) so the kernel computes
    x @ W + b.  All layer widths here are <= 128, so DP = 128 and the whole
    bf16 weight stack (< 100 KiB) stays resident in VMEM for the entire grid.
    """
    DP = _round_up(max(max(w.shape) for w, _ in params), LANE)
    ws, bs = [], []
    for w, b in params:
        wp = jnp.zeros((DP, DP), jnp.bfloat16)
        wp = wp.at[: w.shape[0], : w.shape[1]].set(w.astype(jnp.bfloat16))
        bp = jnp.zeros((1, DP), jnp.float32)
        bp = bp.at[:, : b.shape[-1]].set(b.reshape(1, -1).astype(jnp.float32))
        ws.append(wp)
        bs.append(bp)
    return jnp.stack(ws), jnp.stack(bs)  # (L, DP, DP) bf16, (L, 1, DP) f32


def _pick_batch_tile(batch):
    """Choose (TILE_B, Bp): legal lane layout, minimal padding, >=2 steps when big."""
    b8 = _round_up(max(batch, 1), SUBLANE)
    if b8 <= 256:
        # Single tile == full (padded) batch: the output block's lane dim equals
        # the full array dim, so any multiple of 8 is legal.  Launch-bound here.
        return b8, b8
    # Multi-tile: the transposed output needs TILE_B % 128 == 0.  Pick the
    # candidate with the least batch padding (ties -> larger tile), requiring
    # >= 2 grid steps so v7x can shard the batch axis over its 2 TensorCores.
    best_t, best_bp = 128, _round_up(b8, 128)
    for t in (256, 384, 512):
        bp = _round_up(b8, t)
        if bp // t >= 2 and (bp < best_bp or (bp == best_bp and t > best_t)):
            best_t, best_bp = t, bp
    return best_t, best_bp


@functools.partial(jax.jit, static_argnames=("out_size",))
def mlp_forward(x, w_stack, b_stack, *, out_size):
    B, d_in = x.shape
    L, DP, _ = w_stack.shape
    assert d_in <= DP and out_size <= DP

    OUT_P = _round_up(out_size, SUBLANE)
    TILE_B, Bp = _pick_batch_tile(B)
    grid = (Bp // TILE_B,)

    # Resident-weight VMEM budget (pipeline double-buffers even constant-index
    # operands).  Fine at DP=128 (~200 KiB); the assert guards v7x's smaller
    # VMEM.  TODO(synk): for much larger hidden sizes switch to a layer grid
    # axis ("arbitrary") with per-layer pipelined weight blocks and per-layer DP.
    resident_bytes = 2 * (w_stack.size * 2 + b_stack.size * 4)
    assert resident_bytes < 16 * 1024 * 1024, "weight stack too big to keep resident"

    flops = 2 * Bp * L * DP * DP                      # what the MXU actually issues
    bytes_accessed = (B * d_in * 4                    # x read: raw f32, unpadded
                      + w_stack.size * 2 + b_stack.size * 4
                      + OUT_P * Bp * 4)               # transposed output slab

    out_t = pl.pallas_call(
        _mlp_kernel,
        out_shape=jax.ShapeDtypeStruct((OUT_P, Bp), jnp.float32),
        grid_spec=pltpu.PrefetchScalarGridSpec(
            num_scalar_prefetch=0,
            grid=grid,
            in_specs=[
                # x: pipelined per batch tile; block covers the full (unpadded)
                # feature width, so no host-side pad/cast pass is needed.
                pl.BlockSpec((TILE_B, d_in), lambda i: (i, 0)),
                # W, b: resident across the whole grid (constant index_map).
                pl.BlockSpec((L, DP, DP), lambda i: (0, 0, 0)),
                pl.BlockSpec((L, 1, DP), lambda i: (0, 0, 0)),
            ],
            # Transposed output: OUT_P sublanes x TILE_B lanes (lane-dense).
            out_specs=pl.BlockSpec((OUT_P, TILE_B), lambda i: (0, i)),
            scratch_shapes=[pltpu.VMEM((TILE_B, DP), jnp.bfloat16)],
        ),
        compiler_params=pltpu.CompilerParams(
            dimension_semantics=("parallel",),   # v7x: batch tiles across 2 TCs
            vmem_limit_bytes=32 * 1024 * 1024,
        ),
        cost_estimate=pl.CostEstimate(
            flops=flops, transcendentals=0, bytes_accessed=bytes_accessed),
    )(x, w_stack, b_stack)

    # Tiny slice of the transposed slab; back to (B, out_size).
    return out_t[:out_size, :B].T


# ------------------------ deterministic param init ---------------------------
def init_params(key, input_size, hidden_sizes, output_size):
    """PyTorch-Linear-style uniform init; weights stored as (in, out)."""
    sizes = [input_size] + list(hidden_sizes) + [output_size]
    params = []
    for i in range(len(sizes) - 1):
        fan_in, fan_out = sizes[i], sizes[i + 1]
        key, kw, kb = jax.random.split(key, 3)
        bound = 1.0 / (fan_in ** 0.5)
        w = jax.random.uniform(kw, (fan_in, fan_out), jnp.float32, -bound, bound)
        b = jax.random.uniform(kb, (fan_out,), jnp.float32, -bound, bound)
        params.append((w, b))
    return params


def mlp_reference(x, params):
    """Plain-JAX reference with the same bf16-input / f32-accumulate numerics.

    Documented precision choice: activations/weights are fed to the MXU in bf16
    (f32 accumulation), so results differ from a pure-f32 PyTorch forward at
    the ~1e-3 level.
    """
    h = x
    n = len(params)
    for i, (w, b) in enumerate(params):
        z = jnp.dot(h.astype(jnp.bfloat16), w.astype(jnp.bfloat16),
                    preferred_element_type=jnp.float32) + b
        h = jnp.maximum(z, 0.0) if i < n - 1 else z
    return h


# --------------------------------- main ---------------------------------------
if __name__ == "__main__":
    # NeuralNetwork(input_size=32, hidden_sizes=[64, 64], output_size=8), eval mode.
    # NOTE: at tiny batches the call is launch-bound (a plain jnp dot chain would
    # be as fast); the fused kernel pays off once B reaches the hundreds.
    input_size, hidden_sizes, output_size = 32, [64, 64], 8

    key = jax.random.PRNGKey(0)
    key, kx_small, kx_big = jax.random.split(key, 3)
    params = init_params(key, input_size, hidden_sizes, output_size)
    w_stack, b_stack = pack_params(params)

    # Two checks: single-tile path (batch=8) and ragged multi-tile path (batch=300
    # -> TILE_B=128, 3 grid steps, padded last tile).
    for batch, kx in ((8, kx_small), (300, kx_big)):
        x = jax.random.normal(kx, (batch, input_size), jnp.float32)
        out = mlp_forward(x, w_stack, b_stack, out_size=output_size)
        out = jax.block_until_ready(out)
        ref = mlp_reference(x, params)
        assert out.shape == (batch, output_size), out.shape
        err = float(jnp.max(jnp.abs(out - ref)))
        assert jnp.allclose(out, ref, atol=2e-3, rtol=2e-3), (
            f"mismatch vs reference at batch={batch}: {err}")

    print("KERNEL_OK")
</pallas_src>

<mosaic_0001>
module attributes {stable_mosaic.version = 11 : i64} {
  func.func @_mlp_kernel(%arg0: i32, %arg1: memref<8x32xf32, #tpu.memory_space<vmem>>, %arg2: memref<3x128x128xbf16, #tpu.memory_space<vmem>>, %arg3: memref<3x1x128xf32, #tpu.memory_space<vmem>>, %arg4: memref<8x8xf32, #tpu.memory_space<vmem>>, %arg5: memref<8x128xbf16, #tpu.memory_space<vmem>>) attributes {dimension_semantics = [#tpu.dimension_semantics<parallel>], iteration_bounds = array<i64: 1>, scalar_prefetch = 0 : i64, scratch_operands = 1 : i64, tpu.core_type = #tpu.core_type<tc>, window_params = [{transform_indices = @transform_0, window_bounds = array<i64: 8, 32>}, {pipeline_mode = #tpu.pipeline_mode<synchronous>, transform_indices = @transform_1, window_bounds = array<i64: 3, 128, 128>}, {pipeline_mode = #tpu.pipeline_mode<synchronous>, transform_indices = @transform_2, window_bounds = array<i64: 3, 1, 128>}, {transform_indices = @transform_3, window_bounds = array<i64: 8, 8>}]} {
    %c0_i32 = arith.constant 0 : i32
    %0 = arith.cmpi eq, %arg0, %c0_i32 : i32
    %1 = arith.extui %0 : i1 to i32
    %c0_i32_0 = arith.constant 0 : i32
    %2 = arith.cmpi ne, %1, %c0_i32_0 : i32
    scf.if %2 {
      %cst_28 = arith.constant 0.000000e+00 : bf16
      %37 = vector.broadcast %cst_28 : bf16 to vector<8x128xbf16>
      %c0_29 = arith.constant 0 : index
      %c0_30 = arith.constant 0 : index
      %38 = vector.load %arg5[%c0_29, %c0_30] : memref<8x128xbf16, #tpu.memory_space<vmem>>, vector<8x128xbf16>
      tpu.vector_store %arg5[%c0_29, %c0_30], %37 {strides = array<i32>} : memref<8x128xbf16, #tpu.memory_space<vmem>>, vector<8x128xbf16>,
    } else {
    }
    %c0 = arith.constant 0 : index
    %c0_1 = arith.constant 0 : index
    %3 = vector.load %arg1[%c0, %c0_1] : memref<8x32xf32, #tpu.memory_space<vmem>>, vector<8x32xf32>
    %4 = arith.truncf %3 : vector<8x32xf32> to vector<8x32xbf16>
    %c0_2 = arith.constant 0 : index
    %c0_3 = arith.constant 0 : index
    %5 = vector.load %arg5[%c0_2, %c0_3] : memref<8x128xbf16, #tpu.memory_space<vmem>>, vector<8x32xbf16>
    tpu.vector_store %arg5[%c0_2, %c0_3], %4 {strides = array<i32>} : memref<8x128xbf16, #tpu.memory_space<vmem>>, vector<8x32xbf16>,
    %c0_4 = arith.constant 0 : index
    %c0_5 = arith.constant 0 : index
    %6 = vector.load %arg5[%c0_4, %c0_5] : memref<8x128xbf16, #tpu.memory_space<vmem>>, vector<8x128xbf16>
    %c0_6 = arith.constant 0 : index
    %c0_7 = arith.constant 0 : index
    %c0_8 = arith.constant 0 : index
    %7 = vector.load %arg2[%c0_6, %c0_7, %c0_8] : memref<3x128x128xbf16, #tpu.memory_space<vmem>>, vector<1x128x128xbf16>
    %8 = vector.shape_cast %7 : vector<1x128x128xbf16> to vector<128x128xbf16>
    %cst = arith.constant dense<0.000000e+00> : vector<8x128xf32>
    %9 = tpu.matmul %6, %8, %cst {dimension_numbers = #tpu.dot_dimension_numbers<[1], [0], [0], [1], [0, 0, 1, 1], [], []>} : vector<8x128xbf16>, vector<128x128xbf16>, vector<8x128xf32> -> vector<8x128xf32>
    %c0_9 = arith.constant 0 : index
    %c0_10 = arith.constant 0 : index
    %c0_11 = arith.constant 0 : index
    %10 = vector.load %arg3[%c0_9, %c0_10, %c0_11] : memref<3x1x128xf32, #tpu.memory_space<vmem>>, vector<1x1x128xf32>
    %11 = vector.shape_cast %10 : vector<1x1x128xf32> to vector<1x128xf32>
    %12 = vector.broadcast %11 : vector<1x128xf32> to vector<8x128xf32>
    %13 = arith.addf %9, %12 : vector<8x128xf32>
    %cst_12 = arith.constant 0.000000e+00 : f32
    %14 = vector.broadcast %cst_12 : f32 to vector<8x128xf32>
    %15 = arith.maximumf %13, %14 : vector<8x128xf32>
    %16 = arith.truncf %15 : vector<8x128xf32> to vector<8x128xbf16>
    %c1 = arith.constant 1 : index
    %c0_13 = arith.constant 0 : index
    %c0_14 = arith.constant 0 : index
    %17 = vector.load %arg2[%c1, %c0_13, %c0_14] : memref<3x128x128xbf16, #tpu.memory_space<vmem>>, vector<1x128x128xbf16>
    %18 = vector.shape_cast %17 : vector<1x128x128xbf16> to vector<128x128xbf16>
    %cst_15 = arith.constant dense<0.000000e+00> : vector<8x128xf32>
    %19 = tpu.matmul %16, %18, %cst_15 {dimension_numbers = #tpu.dot_dimension_numbers<[1], [0], [0], [1], [0, 0, 1, 1], [], []>} : vector<8x128xbf16>, vector<128x128xbf16>, vector<8x128xf32> -> vector<8x128xf32>
    %c1_16 = arith.constant 1 : index
    %c0_17 = arith.constant 0 : index
    %c0_18 = arith.constant 0 : index
    %20 = vector.load %arg3[%c1_16, %c0_17, %c0_18] : memref<3x1x128xf32, #tpu.memory_space<vmem>>, vector<1x1x128xf32>
    %21 = vector.shape_cast %20 : vector<1x1x128xf32> to vector<1x128xf32>
    %22 = vector.broadcast %21 : vector<1x128xf32> to vector<8x128xf32>
    %23 = arith.addf %19, %22 : vector<8x128xf32>
    %cst_19 = arith.constant 0.000000e+00 : f32
    %24 = vector.broadcast %cst_19 : f32 to vector<8x128xf32>
    %25 = arith.maximumf %23, %24 : vector<8x128xf32>
    %26 = arith.truncf %25 : vector<8x128xf32> to vector<8x128xbf16>
    %c2 = arith.constant 2 : index
    %c0_20 = arith.constant 0 : index
    %c0_21 = arith.constant 0 : index
    %27 = vector.load %arg2[%c2, %c0_20, %c0_21] : memref<3x128x128xbf16, #tpu.memory_space<vmem>>, vector<1x128x128xbf16>
    %28 = vector.shape_cast %27 : vector<1x128x128xbf16> to vector<128x128xbf16>
    %cst_22 = arith.constant dense<0.000000e+00> : vector<8x128xf32>
    %29 = tpu.matmul %26, %28, %cst_22 {dimension_numbers = #tpu.dot_dimension_numbers<[1], [0], [0], [1], [0, 0, 1, 1], [], []>} : vector<8x128xbf16>, vector<128x128xbf16>, vector<8x128xf32> -> vector<8x128xf32>
    %c2_23 = arith.constant 2 : index
    %c0_24 = arith.constant 0 : index
    %c0_25 = arith.constant 0 : index
    %30 = vector.load %arg3[%c2_23, %c0_24, %c0_25] : memref<3x1x128xf32, #tpu.memory_space<vmem>>, vector<1x1x128xf32>
    %31 = vector.shape_cast %30 : vector<1x1x128xf32> to vector<1x128xf32>
    %32 = vector.broadcast %31 : vector<1x128xf32> to vector<8x128xf32>
    %33 = arith.addf %29, %32 : vector<8x128xf32>
    %34 = tpu.transpose %33, [1, 0] : vector<8x128xf32> -> vector<128x8xf32>
    %35 = vector.extract_strided_slice %34 {offsets = [0, 0], sizes = [8, 8], strides = [1, 1]} : vector<128x8xf32> to vector<8x8xf32>
    %c0_26 = arith.constant 0 : index
    %c0_27 = arith.constant 0 : index
    %36 = vector.load %arg4[%c0_26, %c0_27] : memref<8x8xf32, #tpu.memory_space<vmem>>, vector<8x8xf32>
    tpu.vector_store %arg4[%c0_26, %c0_27], %35 {strides = array<i32>} : memref<8x8xf32, #tpu.memory_space<vmem>>, vector<8x8xf32>,
    return
  }
  func.func @transform_0(%arg0: i32) -> (i32, i32) {
    %c0_i32 = arith.constant 0 : i32
    %c0_i32_0 = arith.constant 0 : i32
    return %arg0, %c0_i32 : i32, i32
  }
  func.func @transform_1(%arg0: i32) -> (i32, i32, i32) {
    %c0_i32 = arith.constant 0 : i32
    %c0_i32_0 = arith.constant 0 : i32
    %c0_i32_1 = arith.constant 0 : i32
    %c0_i32_2 = arith.constant 0 : i32
    return %c0_i32, %c0_i32_0, %c0_i32_1 : i32, i32, i32
  }
  func.func @transform_2(%arg0: i32) -> (i32, i32, i32) {
    %c0_i32 = arith.constant 0 : i32
    %c0_i32_0 = arith.constant 0 : i32
    %c0_i32_1 = arith.constant 0 : i32
    %c0_i32_2 = arith.constant 0 : i32
    return %c0_i32, %c0_i32_0, %c0_i32_1 : i32, i32, i32
  }
  func.func @transform_3(%arg0: i32) -> (i32, i32) {
    %c0_i32 = arith.constant 0 : i32
    %c0_i32_0 = arith.constant 0 : i32
    return %c0_i32, %arg0 : i32, i32
  }
}

</mosaic_0001>

<llo_original>
// kernel: mlp_forward.1
$region0: #{mlp_forward.1}
  #allocation0 [shape = 'u32[]', space=smem, size = 0x4, offset = 0x4, fixed_abs, tag = 'smem constant byte address 0x4 - core index']
  #allocation1 [shape = 'u32[72,128]{1,0:T(1,128)}', space=vmem, size = 0x9000, scoped, tag = 'internal scratch']
  #allocation2 [shape = 'bf16[8,128]{1,0:T(8,128)(2,1)}', space=vmem, size = 0x800, scoped, tag = 'scratch operand']
  %s0 = inlined_call_operand.hbm [shape: f32[8,32], index: 0, kind: input, shape index: {}]
  %s1 = inlined_call_operand.hbm [shape: bf16[3,128,128], index: 1, kind: input, shape index: {}]
  %s2 = inlined_call_operand.hbm [shape: f32[3,1,128], index: 2, kind: input, shape index: {}]
  %s3 = inlined_call_operand.vmem [shape: f32[8,8], index: 3, kind: output, shape index: {}]
  %s4 = sld [smem:[#allocation0]]
  $region38: #{mlp_forward.1} parent=0
    _
  %s6 = ssub.s32 1, %s4
  %s7 = scalar_select 0, %s6, %s4
  $region1: #{mlp_forward.1} parent=0
    #allocation3 [shape = 'u8[4096]{0}', space=vmem, size = 0x1000, scoped, tag = 'input window, operand 0, single buffered']
    #allocation4 [shape = 's32[1]{0}', space=sflag, size = 0x4, scoped, tag = 'scoped memory for mlp_forward.1']
    #allocation5 [shape = 'u8[98304]{0}', space=vmem, size = 0x18000, scoped, tag = 'input window, operand 1, single buffered']
    #allocation6 [shape = 's32[1]{0}', space=sflag, size = 0x4, scoped, tag = 'scoped memory for mlp_forward.1']
    #allocation7 [shape = 'u8[1536]{0}', space=vmem, size = 0x800, scoped, tag = 'input window, operand 2, single buffered']
    %8 = vsyncpa [#allocation4], 0
    %9 = vsyncpa [#allocation6], 0
    // Predicated region
    $region2: #{mlp_forward.1} parent=1 // pred_check
      _
    $region3: #{mlp_forward.1} parent=1 // pred_check_branch
      %11 = sbr.rel (0) target = $region5
    $region4: #{mlp_forward.1} parent=1 // pred_region
      %13 = vsyncadd [#allocation4], 0
      %s15 = sshll.u32 %s0, 4
      %s16 = int_to_ptr.hbm [resolvable:$true] %s15
      %s17 = sshll.u32 [#allocation3], 4
      %s18 = int_to_ptr.vmem [resolvable:$true] %s17
      %20 = dma.hbm_to_vmem [thread:$0]  %s16, 128, %s18, [#allocation4]
    $region5: #{mlp_forward.1} parent=1 // pred_fallthru
      _
    // Predicated region
    $region6: #{mlp_forward.1} parent=1 // pred_check
      _
    $region7: #{mlp_forward.1} parent=1 // pred_check_branch
      %22 = sbr.rel (0) target = $region9
    $region8: #{mlp_forward.1} parent=1 // pred_region
      %24 = vsyncadd [#allocation6], 0
      %s25 = sshll.u32 %s1, 4
      %s26 = int_to_ptr.hbm [resolvable:$true] %s25
      %s27 = sshll.u32 [#allocation5], 4
      %s28 = int_to_ptr.vmem [resolvable:$true] %s27
      %33 = dma.hbm_to_vmem [thread:$0]  %s26, 3072, %s28, [#allocation6], 64, 64, 4
    $region9: #{mlp_forward.1} parent=1 // pred_fallthru
      _
    // Predicated region
    $region10: #{mlp_forward.1} parent=1 // pred_check
      _
    $region11: #{mlp_forward.1} parent=1 // pred_check_branch
      %35 = sbr.rel (0) target = $region13
    $region12: #{mlp_forward.1} parent=1 // pred_region
      %37 = vsyncadd [#allocation6], 0
      %s38 = sshll.u32 %s2, 4
      %s39 = int_to_ptr.hbm [resolvable:$true] %s38
      %s40 = sshll.u32 [#allocation7], 4
      %s41 = int_to_ptr.vmem [resolvable:$true] %s40
      %46 = dma.hbm_to_vmem [thread:$0]  %s39, 48, %s41, [#allocation6], 16, 16, 1
    $region13: #{mlp_forward.1} parent=1 // pred_fallthru
      _
    // Predicated region
    $region14: #{mlp_forward.1} parent=1 // pred_check
      _
    $region15: #{mlp_forward.1} parent=1 // pred_check_branch
      %48 = sbr.rel (0) target = $region17
    $region16: #{mlp_forward.1} parent=1 // pred_region
      %50 = dma.done [#allocation4], 128
    $region17: #{mlp_forward.1} parent=1 // pred_fallthru
      _
    // Predicated region
    $region18: #{mlp_forward.1} parent=1 // pred_check
      _
    $region19: #{mlp_forward.1} parent=1 // pred_check_branch
      %52 = sbr.rel (0) target = $region21
    $region20: #{mlp_forward.1} parent=1 // pred_region
      %54 = dma.done [#allocation6], 3072
    $region21: #{mlp_forward.1} parent=1 // pred_fallthru
      _
    // Predicated region
    $region22: #{mlp_forward.1} parent=1 // pred_check
      _
    $region23: #{mlp_forward.1} parent=1 // pred_check_branch
      %56 = sbr.rel (0) target = $region25
    $region24: #{mlp_forward.1} parent=1 // pred_region
      %58 = dma.done [#allocation6], 48
    $region25: #{mlp_forward.1} parent=1 // pred_fallthru
      _
    %p60 = scmp.eq.s32.totalorder 0, 0
    // Predicated region
    $region26: #{mlp_forward.1} parent=1 // pred_check
      %p61 = pneg %p60
    $region27: #{mlp_forward.1} parent=1 // pred_check_branch
      %63 = sbr.rel (%p61) target = $region29
    $region28: #{mlp_forward.1} parent=1 // pred_region
      %64 = vst [vmem:[#allocation2] sm:$0xf] 0
    $region29: #{mlp_forward.1} parent=1 // pred_fallthru
      _
    %v65 = vld [vmem:[#allocation3] sm:$0xff]
    %v66 = vpack.c.bf16 %v65, %v65
    %vm67 = vcmask 257024
    %68 = vst.msk [vmem:[#allocation2] sm:$0xf] %vm67, %v66
    %v69 = vld [vmem:[#allocation2] sm:$0xf]
    %v70 = vld [vmem:[#allocation5] sm:$0xf]
    %v71 = vld [vmem:[#allocation5 + $0x4] sm:$0xf]
    %v72 = vld [vmem:[#allocation5 + $0x8] sm:$0xf]
    %v73 = vld [vmem:[#allocation5 + $0xc] sm:$0xf]
    %v74 = vld [vmem:[#allocation5 + $0x10] sm:$0xf]
    %v75 = vld [vmem:[#allocation5 + $0x14] sm:$0xf]
    %v76 = vld [vmem:[#allocation5 + $0x18] sm:$0xf]
    %v77 = vld [vmem:[#allocation5 + $0x1c] sm:$0xf]
    %v78 = vld [vmem:[#allocation5 + $0x20] sm:$0xf]
    %v79 = vld [vmem:[#allocation5 + $0x24] sm:$0xf]
    %v80 = vld [vmem:[#allocation5 + $0x28] sm:$0xf]
    %v81 = vld [vmem:[#allocation5 + $0x2c] sm:$0xf]
    %v82 = vld [vmem:[#allocation5 + $0x30] sm:$0xf]
    %v83 = vld [vmem:[#allocation5 + $0x34] sm:$0xf]
    %v84 = vld [vmem:[#allocation5 + $0x38] sm:$0xf]
    %v85 = vld [vmem:[#allocation5 + $0x3c] sm:$0xf]
    %v86 = vld [vmem:[#allocation7] sm:$0x1]
    %v88 = vperm.slane %v86, 0
    %v106 = vunpack.c.l.b16 %v70
    %v107 = vunpack.c.l.b16 %v71
    %v108 = vunpack.c.l.b16 %v72
    %v109 = vunpack.c.l.b16 %v73
    %v110 = vunpack.c.l.b16 %v74
    %v111 = vunpack.c.l.b16 %v75
    %v112 = vunpack.c.l.b16 %v76
    %v113 = vunpack.c.l.b16 %v77
    %v114 = vunpack.c.l.b16 %v78
    %v115 = vunpack.c.l.b16 %v79
    %v116 = vunpack.c.l.b16 %v80
    %v117 = vunpack.c.l.b16 %v81
    %v118 = vunpack.c.l.b16 %v82
    %v119 = vunpack.c.l.b16 %v83
    %v120 = vunpack.c.l.b16 %v84
    %v121 = vunpack.c.l.b16 %v85
    %v122 = vpack.c.b16 %v107, %v106
    %v123 = vpack.c.b16 %v109, %v108
    %v124 = vpack.c.b16 %v111, %v110
    %v125 = vpack.c.b16 %v113, %v112
    %v126 = vpack.c.b16 %v115, %v114
    %v127 = vpack.c.b16 %v117, %v116
    %v128 = vpack.c.b16 %v119, %v118
    %v129 = vpack.c.b16 %v121, %v120
    %138 = vmatpush.bf16.msra.mxu0 %v129
    %139 = vmatpush.bf16.msra.mxu0 %v128
    %140 = vmatpush.bf16.msra.mxu0 %v127
    %141 = vmatpush.bf16.msra.mxu0 %v126
    %142 = vmatpush.bf16.msra.mxu0 %v125
    %143 = vmatpush.bf16.msra.mxu0 %v124
    %144 = vmatpush.bf16.msra.mxu0 %v123
    %145 = vmatpush.bf16.msra.mxu0 %v122
    %146 = vmatmul.bf16.gmra.mxu0 %v69
    %v147 = vpop.f32.mrf.mxu0
    %v148 = vadd.f32 %v88, %v147
    %v149 = vpop.f32.mrf.mxu0
    %150 = vdwg.mxu0
    %v151 = vmax.f32 %v148, 0.0
    %v152 = vpack.c.bf16 %v151, %v151
    %s153 = scalar_lea.vmem [#allocation5], 64
    %v154 = vld [vmem:[%s153] sm:$0xf]
    %v155 = vld [vmem:[%s153 + $0x4] sm:$0xf]
    %v156 = vld [vmem:[%s153 + $0x8] sm:$0xf]
    %v157 = vld [vmem:[%s153 + $0xc] sm:$0xf]
    %v158 = vld [vmem:[%s153 + $0x10] sm:$0xf]
    %v159 = vld [vmem:[%s153 + $0x14] sm:$0xf]
    %v160 = vld [vmem:[%s153 + $0x18] sm:$0xf]
    %v161 = vld [vmem:[%s153 + $0x1c] sm:$0xf]
    %v162 = vld [vmem:[%s153 + $0x20] sm:$0xf]
    %v163 = vld [vmem:[%s153 + $0x24] sm:$0xf]
    %v164 = vld [vmem:[%s153 + $0x28] sm:$0xf]
    %v165 = vld [vmem:[%s153 + $0x2c] sm:$0xf]
    %v166 = vld [vmem:[%s153 + $0x30] sm:$0xf]
    %v167 = vld [vmem:[%s153 + $0x34] sm:$0xf]
    %v168 = vld [vmem:[%s153 + $0x38] sm:$0xf]
    %v169 = vld [vmem:[%s153 + $0x3c] sm:$0xf]
    %s170 = scalar_lea.vmem [#allocation7], 1
    %v171 = vld [vmem:[%s170] sm:$0x1]
    %v173 = vperm.slane %v171, 0
    %v191 = vunpack.c.l.b16 %v154
    %v192 = vunpack.c.l.b16 %v155
    %v193 = vunpack.c.l.b16 %v156
    %v194 = vunpack.c.l.b16 %v157
    %v195 = vunpack.c.l.b16 %v158
    %v196 = vunpack.c.l.b16 %v159
    %v197 = vunpack.c.l.b16 %v160
    %v198 = vunpack.c.l.b16 %v161
    %v199 = vunpack.c.l.b16 %v162
    %v200 = vunpack.c.l.b16 %v163
    %v201 = vunpack.c.l.b16 %v164
    %v202 = vunpack.c.l.b16 %v165
    %v203 = vunpack.c.l.b16 %v166
    %v204 = vunpack.c.l.b16 %v167
    %v205 = vunpack.c.l.b16 %v168
    %v206 = vunpack.c.l.b16 %v169
    %v207 = vpack.c.b16 %v192, %v191
    %v208 = vpack.c.b16 %v194, %v193
    %v209 = vpack.c.b16 %v196, %v195
    %v210 = vpack.c.b16 %v198, %v197
    %v211 = vpack.c.b16 %v200, %v199
    %v212 = vpack.c.b16 %v202, %v201
    %v213 = vpack.c.b16 %v204, %v203
    %v214 = vpack.c.b16 %v206, %v205
    %223 = vmatpush.bf16.msra.mxu0 %v214
    %224 = vmatpush.bf16.msra.mxu0 %v213
    %225 = vmatpush.bf16.msra.mxu0 %v212
    %226 = vmatpush.bf16.msra.mxu0 %v211
    %227 = vmatpush.bf16.msra.mxu0 %v210
    %228 = vmatpush.bf16.msra.mxu0 %v209
    %229 = vmatpush.bf16.msra.mxu0 %v208
    %230 = vmatpush.bf16.msra.mxu0 %v207
    %231 = vmatmul.bf16.gmra.mxu0 %v152
    %v232 = vpop.f32.mrf.mxu0
    %v233 = vadd.f32 %v173, %v232
    %v234 = vpop.f32.mrf.mxu0
    %235 = vdwg.mxu0
    %v236 = vmax.f32 %v233, 0.0
    %v237 = vpack.c.bf16 %v236, %v236
    %s238 = scalar_lea.vmem [#allocation5], 128
    %v239 = vld [vmem:[%s238] sm:$0xf]
    %v240 = vld [vmem:[%s238 + $0x4] sm:$0xf]
    %v241 = vld [vmem:[%s238 + $0x8] sm:$0xf]
    %v242 = vld [vmem:[%s238 + $0xc] sm:$0xf]
    %v243 = vld [vmem:[%s238 + $0x10] sm:$0xf]
    %v244 = vld [vmem:[%s238 + $0x14] sm:$0xf]
    %v245 = vld [vmem:[%s238 + $0x18] sm:$0xf]
    %v246 = vld [vmem:[%s238 + $0x1c] sm:$0xf]
    %v247 = vld [vmem:[%s238 + $0x20] sm:$0xf]
    %v248 = vld [vmem:[%s238 + $0x24] sm:$0xf]
    %v249 = vld [vmem:[%s238 + $0x28] sm:$0xf]
    %v250 = vld [vmem:[%s238 + $0x2c] sm:$0xf]
    %v251 = vld [vmem:[%s238 + $0x30] sm:$0xf]
    %v252 = vld [vmem:[%s238 + $0x34] sm:$0xf]
    %v253 = vld [vmem:[%s238 + $0x38] sm:$0xf]
    %v254 = vld [vmem:[%s238 + $0x3c] sm:$0xf]
    %s255 = scalar_lea.vmem [#allocation7], 2
    %v256 = vld [vmem:[%s255] sm:$0x1]
    %v258 = vperm.slane %v256, 0
    %v276 = vunpack.c.l.b16 %v239
    %v277 = vunpack.c.l.b16 %v240
    %v278 = vunpack.c.l.b16 %v241
    %v279 = vunpack.c.l.b16 %v242
    %v280 = vunpack.c.l.b16 %v243
    %v281 = vunpack.c.l.b16 %v244
    %v282 = vunpack.c.l.b16 %v245
    %v283 = vunpack.c.l.b16 %v246
    %v284 = vunpack.c.l.b16 %v247
    %v285 = vunpack.c.l.b16 %v248
    %v286 = vunpack.c.l.b16 %v249
    %v287 = vunpack.c.l.b16 %v250
    %v288 = vunpack.c.l.b16 %v251
    %v289 = vunpack.c.l.b16 %v252
    %v290 = vunpack.c.l.b16 %v253
    %v291 = vunpack.c.l.b16 %v254
    %v292 = vpack.c.b16 %v277, %v276
    %v293 = vpack.c.b16 %v279, %v278
    %v294 = vpack.c.b16 %v281, %v280
    %v295 = vpack.c.b16 %v283, %v282
    %v296 = vpack.c.b16 %v285, %v284
    %v297 = vpack.c.b16 %v287, %v286
    %v298 = vpack.c.b16 %v289, %v288
    %v299 = vpack.c.b16 %v291, %v290
    %308 = vmatpush.bf16.msra.mxu0 %v299
    %309 = vmatpush.bf16.msra.mxu0 %v298
    %310 = vmatpush.bf16.msra.mxu0 %v297
    %311 = vmatpush.bf16.msra.mxu0 %v296
    %312 = vmatpush.bf16.msra.mxu0 %v295
    %313 = vmatpush.bf16.msra.mxu0 %v294
    %314 = vmatpush.bf16.msra.mxu0 %v293
    %315 = vmatpush.bf16.msra.mxu0 %v292
    %316 = vmatmul.bf16.gmra.mxu0 %v237
    %v317 = vpop.f32.mrf.mxu0
    %v318 = vadd.f32 %v258, %v317
    %v319 = vpop.f32.mrf.mxu0
    %320 = vdwg.mxu0
    %321 = vxpose.xlu0.b32.start [1/16] %v318, 128
    %322 = vxpose.xlu0.b32.cont [2/16] 0.0, 128
    %323 = vxpose.xlu0.b32.cont [3/16] 0.0, 128
    %324 = vxpose.xlu0.b32.cont [4/16] 0.0, 128
    %325 = vxpose.xlu0.b32.cont [5/16] 0.0, 128
    %326 = vxpose.xlu0.b32.cont [6/16] 0.0, 128
    %327 = vxpose.xlu0.b32.cont [7/16] 0.0, 128
    %328 = vxpose.xlu0.b32.cont [8/16] 0.0, 128
    %329 = vxpose.xlu0.b32.cont [9/16] 0.0, 128
    %330 = vxpose.xlu0.b32.cont [10/16] 0.0, 128
    %331 = vxpose.xlu0.b32.cont [11/16] 0.0, 128
    %332 = vxpose.xlu0.b32.cont [12/16] 0.0, 128
    %333 = vxpose.xlu0.b32.cont [13/16] 0.0, 128
    %334 = vxpose.xlu0.b32.cont [14/16] 0.0, 128
    %335 = vxpose.xlu0.b32.cont [15/16] 0.0, 128
    %336 = vxpose.xlu0.b32.end [16/16] 0.0, 128
    %v337 = vpop.trf.xlu0
    %v338 = vpop.trf.xlu0
    %v339 = vpop.trf.xlu0
    %v340 = vpop.trf.xlu0
    %v341 = vpop.trf.xlu0
    %v342 = vpop.trf.xlu0
    %v343 = vpop.trf.xlu0
    %v344 = vpop.trf.xlu0
    %v345 = vpop.trf.xlu0
    %v346 = vpop.trf.xlu0
    %v347 = vpop.trf.xlu0
    %v348 = vpop.trf.xlu0
    %v349 = vpop.trf.xlu0
    %v350 = vpop.trf.xlu0
    %v351 = vpop.trf.xlu0
    %v352 = vpop.trf.xlu0
    %vm353 = vcmask 64512
    %354 = vst.msk [vmem:[%s3] sm:$0xff] %vm353, %v337
    // Predicated region
    $region30: #{mlp_forward.1} parent=1 // pred_check
      _
    $region31: #{mlp_forward.1} parent=1 // pred_check_branch
      %356 = sbr.rel (0) target = $region33
    $region32: #{mlp_forward.1} parent=1 // pred_region
      _
    $region33: #{mlp_forward.1} parent=1 // pred_fallthru
      _
    // Predicated region
    $region34: #{mlp_forward.1} parent=1 // pred_check
      _
    $region35: #{mlp_forward.1} parent=1 // pred_check_branch
      %358 = sbr.rel (0) target = $region37
    $region36: #{mlp_forward.1} parent=1 // pred_region
      _
    $region37: #{mlp_forward.1} parent=1 // pred_fallthru
      _
    %359 = vsyncpa [#allocation4], 1
    %360 = vsyncpa [#allocation6], 1

</llo_original>
